<compile_context>
chip_gen: v5e
topology: v5e:2x2
jax: 0.10.0
libtpu: 0.0.40
codegen_flags: <defaults>
</compile_context>

<pallas_src>
import functools

import jax
import jax.numpy as jnp
from jax.experimental import pallas as pl
from jax.experimental.pallas import tpu as pltpu

_LANE = 128  # lane width / output-dim padding granularity


def _round_up(x, m):
    return ((x + m - 1) // m) * m


def _gmu_kernel(xh_ref, xg_ref, xz_ref,
                wh_ref, wg_ref, wz_ref,
                bh_ref, bg_ref, bz_ref,
                out_ref, *, gate_lo, matmul_dtype):
    """One batch tile.

    Weights are augmented: columns [0:O] are the transform, columns
    [gate_lo:gate_lo+3] hold that modality's slice of the gate weight.
    The gate bias is folded into bh at the gate lanes.
    """
    def dot(x_ref, w_ref, b_ref):
        x = x_ref[...].astype(matmul_dtype)          # in-kernel cast (VPU)
        acc = jnp.dot(x, w_ref[...], preferred_element_type=jnp.float32)
        return acc + b_ref[...]                      # f32 epilogue

    pre_h = dot(xh_ref, wh_ref, bh_ref)
    pre_g = dot(xg_ref, wg_ref, bg_ref)
    pre_z = dot(xz_ref, wz_ref, bz_ref)

    h_h = jnp.tanh(pre_h)
    h_g = jnp.tanh(pre_g)
    h_z = jnp.tanh(pre_z)

    # Gate logits = sum of per-modality partials (exact decomposition of the
    # concat matmul); gate bias already folded into pre_h's gate lanes.
    lg = (pre_h[:, gate_lo:gate_lo + 3]
          + pre_g[:, gate_lo:gate_lo + 3]
          + pre_z[:, gate_lo:gate_lo + 3])
    l0 = lg[:, 0:1]
    l1 = lg[:, 1:2]
    l2 = lg[:, 2:3]

    # 3-way softmax as explicit column arithmetic (VPU + EUP, no XLU reduce).
    m = jnp.maximum(jnp.maximum(l0, l1), l2)
    e0 = jnp.exp(l0 - m)
    e1 = jnp.exp(l1 - m)
    e2 = jnp.exp(l2 - m)
    den = e0 + e1 + e2
    inv = pl.reciprocal(den, approx=True)
    inv = inv * (2.0 - den * inv)                    # one Newton step
    g0 = e0 * inv
    g1 = e1 * inv
    g2 = e2 * inv

    fusion = g0 * h_h + g1 * h_g + g2 * h_z

    # Stash the 3 gate probabilities in the fusion output's padding lanes so
    # there is only one (lane-dense) output array.
    lane = jax.lax.broadcasted_iota(jnp.int32, fusion.shape, 1)
    fused = jnp.where(lane == gate_lo, g0,
                      jnp.where(lane == gate_lo + 1, g1,
                                jnp.where(lane == gate_lo + 2, g2, fusion)))
    out_ref[...] = fused.astype(out_ref.dtype)


def three_way_gmu(x_h, x_g, x_z, params, *,
                  matmul_dtype=jnp.bfloat16, block_b=512):
    """params: dict with pre-transposed (in, out) weights and (1, out) biases.

    Returns (fusion (B, O), gates (B, 3)) in float32.
    """
    B = x_h.shape[0]
    O = params["wh"].shape[1]
    dims = (x_h.shape[1], x_g.shape[1], x_z.shape[1])

    O_pad = _round_up(max(O, 1), _LANE)
    if O_pad - O >= 3:
        N_pad, gate_lo = O_pad, O                    # gates live in the padding
    else:                                            # rare fallback: O ~ multiple of 128
        N_pad, gate_lo = O_pad + _LANE, O_pad

    # --- batch tile + VMEM budget (v7x has only 64 MiB / TC) -----------------
    msize = jnp.dtype(matmul_dtype).itemsize
    TB = max(8, min(_round_up(block_b, 8), _round_up(B, 8)))

    def vmem_est(tb):
        w_bytes = 2 * sum(d * N_pad for d in dims) * msize   # weights (x2 bufs)
        b_bytes = 2 * 3 * N_pad * 4
        x_bytes = 2 * sum(tb * d * 4 for d in dims)          # double-buffered x
        o_bytes = 2 * tb * N_pad * 4
        tmp_bytes = 8 * tb * N_pad * 4                        # f32 intermediates
        return w_bytes + b_bytes + x_bytes + o_bytes + tmp_bytes

    budget = 40 * 1024 * 1024
    while TB > 64 and vmem_est(TB) > budget:
        TB //= 2
    TB = max(8, _round_up(TB, 8))
    vmem_limit = int(min(64 * 1024 * 1024,
                         max(32 * 1024 * 1024, vmem_est(TB) * 3 // 2)))

    # --- one-time weight/bias augmentation (tiny, outside the kernel) --------
    f32 = jnp.float32

    def build_w(w, wgate_m):
        d = w.shape[0]
        out = jnp.zeros((d, N_pad), f32)
        out = out.at[:, :O].set(w.astype(f32))
        out = out.at[:, gate_lo:gate_lo + 3].set(wgate_m.astype(f32))
        return out.astype(matmul_dtype)

    def build_b(b, bgate=None):
        out = jnp.zeros((1, N_pad), f32)
        out = out.at[:, :O].set(b.astype(f32))
        if bgate is not None:
            out = out.at[:, gate_lo:gate_lo + 3].set(bgate.astype(f32))
        return out

    wh = build_w(params["wh"], params["wgate_h"])
    wg = build_w(params["wg"], params["wgate_g"])
    wz = build_w(params["wz"], params["wgate_z"])
    bh = build_b(params["bh"], params["bgate"])      # gate bias folded here
    bg = build_b(params["bg"])
    bz = build_b(params["bz"])

    grid = (pl.cdiv(B, TB),)

    def x_spec(d):
        return pl.BlockSpec((TB, d), lambda i: (i, 0))

    def const_spec(shape):                           # VMEM-resident, not re-DMA'd
        return pl.BlockSpec(shape, lambda i: (0, 0))

    kernel = functools.partial(_gmu_kernel, gate_lo=gate_lo,
                               matmul_dtype=matmul_dtype)

    fused = pl.pallas_call(
        kernel,
        grid=grid,
        out_shape=jax.ShapeDtypeStruct((B, N_pad), jnp.float32),
        in_specs=[x_spec(dims[0]), x_spec(dims[1]), x_spec(dims[2]),
                  const_spec(wh.shape), const_spec(wg.shape), const_spec(wz.shape),
                  const_spec(bh.shape), const_spec(bg.shape), const_spec(bz.shape)],
        out_specs=pl.BlockSpec((TB, N_pad), lambda i: (i, 0)),
        compiler_params=pltpu.CompilerParams(
            dimension_semantics=("parallel",),
            vmem_limit_bytes=vmem_limit),
    )(x_h, x_g, x_z, wh, wg, wz, bh, bg, bz)

    return fused[:, :O], fused[:, gate_lo:gate_lo + 3]


def init_params(key, dim_h, dim_g, dim_z, output_dim):
    """Deterministic PyTorch-style init (uniform +-1/sqrt(fan_in)); gate bias = 1."""
    ks = jax.random.split(key, 8)

    def linear(kw, kb, fan_in, fan_out):
        bound = 1.0 / jnp.sqrt(fan_in)
        w = jax.random.uniform(kw, (fan_in, fan_out), jnp.float32, -bound, bound)
        b = jax.random.uniform(kb, (1, fan_out), jnp.float32, -bound, bound)
        return w, b

    wh, bh = linear(ks[0], ks[1], dim_h, output_dim)
    wg, bg = linear(ks[2], ks[3], dim_g, output_dim)
    wz, bz = linear(ks[4], ks[5], dim_z, output_dim)

    gate_in = dim_h + dim_g + dim_z
    gbound = 1.0 / jnp.sqrt(gate_in)
    wgate = jax.random.uniform(ks[6], (gate_in, 3), jnp.float32, -gbound, gbound)
    bgate = jnp.ones((1, 3), jnp.float32)            # matches gate.bias.data = [1,1,1]

    return dict(
        wh=wh, bh=bh, wg=wg, bg=bg, wz=wz, bz=bz,
        wgate_h=wgate[:dim_h],
        wgate_g=wgate[dim_h:dim_h + dim_g],
        wgate_z=wgate[dim_h + dim_g:],
        bgate=bgate,
    )


def _reference(x_h, x_g, x_z, p, matmul_dtype):
    """Pure-JAX reference mirroring the matmul operand dtype of the kernel."""
    c = lambda a: a.astype(matmul_dtype)
    dot = lambda a, b: jnp.dot(c(a), c(b), preferred_element_type=jnp.float32,
                               precision=jax.lax.Precision.HIGHEST)
    h_h = jnp.tanh(dot(x_h, p["wh"]) + p["bh"])
    h_g = jnp.tanh(dot(x_g, p["wg"]) + p["bg"])
    h_z = jnp.tanh(dot(x_z, p["wz"]) + p["bz"])
    wgate = jnp.concatenate([p["wgate_h"], p["wgate_g"], p["wgate_z"]], axis=0)
    combined = jnp.concatenate([x_h, x_g, x_z], axis=-1)
    gates = jax.nn.softmax(dot(combined, wgate) + p["bgate"], axis=-1)
    fusion = gates[:, 0:1] * h_h + gates[:, 1:2] * h_g + gates[:, 2:3] * h_z
    return fusion, gates


if __name__ == "__main__":
    B, DIM_H, DIM_G, DIM_Z, OUT = 8, 16, 32, 24, 32

    key = jax.random.PRNGKey(0)
    k_xh, k_xg, k_xz, k_p = jax.random.split(key, 4)
    x_h = jax.random.normal(k_xh, (B, DIM_H), jnp.float32)
    x_g = jax.random.normal(k_xg, (B, DIM_G), jnp.float32)
    x_z = jax.random.normal(k_xz, (B, DIM_Z), jnp.float32)
    params = init_params(k_p, DIM_H, DIM_G, DIM_Z, OUT)

    gmu = jax.jit(three_way_gmu, static_argnames=("matmul_dtype", "block_b"))

    # 1) f32 MXU operands: check against the f32 (highest-precision) reference.
    fusion32, gates32 = jax.block_until_ready(
        gmu(x_h, x_g, x_z, params, matmul_dtype=jnp.float32))
    ref_f32, refg_f32 = _reference(x_h, x_g, x_z, params, jnp.float32)
    assert fusion32.shape == (B, OUT) and gates32.shape == (B, 3)
    assert bool(jnp.allclose(fusion32, ref_f32, atol=1e-4, rtol=1e-4))
    assert bool(jnp.allclose(gates32, refg_f32, atol=1e-4, rtol=1e-4))

    # 2) bf16 MXU operands (production path on v5e/v6e/v7x), f32 accumulation:
    #    check against a reference that casts identically.
    fusion16, gates16 = jax.block_until_ready(
        gmu(x_h, x_g, x_z, params, matmul_dtype=jnp.bfloat16))
    ref_b16, refg_b16 = _reference(x_h, x_g, x_z, params, jnp.bfloat16)
    assert fusion16.shape == (B, OUT) and gates16.shape == (B, 3)
    assert bool(jnp.allclose(fusion16, ref_b16, atol=3e-3, rtol=3e-3))
    assert bool(jnp.allclose(gates16, refg_b16, atol=3e-3, rtol=3e-3))

    print("KERNEL_OK")
</pallas_src>

<mosaic_0001>
module attributes {stable_mosaic.version = 11 : i64} {
  func.func @_gmu_kernel(%arg0: i32, %arg1: memref<8x16xf32, #tpu.memory_space<vmem>>, %arg2: memref<8x32xf32, #tpu.memory_space<vmem>>, %arg3: memref<8x24xf32, #tpu.memory_space<vmem>>, %arg4: memref<16x128xf32, #tpu.memory_space<vmem>>, %arg5: memref<32x128xf32, #tpu.memory_space<vmem>>, %arg6: memref<24x128xf32, #tpu.memory_space<vmem>>, %arg7: memref<1x128xf32, #tpu.memory_space<vmem>>, %arg8: memref<1x128xf32, #tpu.memory_space<vmem>>, %arg9: memref<1x128xf32, #tpu.memory_space<vmem>>, %arg10: memref<8x128xf32, #tpu.memory_space<vmem>>) attributes {dimension_semantics = [#tpu.dimension_semantics<parallel>], iteration_bounds = array<i64: 1>, scalar_prefetch = 0 : i64, scratch_operands = 0 : i64, tpu.core_type = #tpu.core_type<tc>, window_params = [{transform_indices = @transform_0, window_bounds = array<i64: 8, 16>}, {transform_indices = @transform_1, window_bounds = array<i64: 8, 32>}, {transform_indices = @transform_2, window_bounds = array<i64: 8, 24>}, {pipeline_mode = #tpu.pipeline_mode<synchronous>, transform_indices = @transform_3, window_bounds = array<i64: 16, 128>}, {pipeline_mode = #tpu.pipeline_mode<synchronous>, transform_indices = @transform_4, window_bounds = array<i64: 32, 128>}, {pipeline_mode = #tpu.pipeline_mode<synchronous>, transform_indices = @transform_5, window_bounds = array<i64: 24, 128>}, {pipeline_mode = #tpu.pipeline_mode<synchronous>, transform_indices = @transform_6, window_bounds = array<i64: 1, 128>}, {pipeline_mode = #tpu.pipeline_mode<synchronous>, transform_indices = @transform_7, window_bounds = array<i64: 1, 128>}, {pipeline_mode = #tpu.pipeline_mode<synchronous>, transform_indices = @transform_8, window_bounds = array<i64: 1, 128>}, {transform_indices = @transform_9, window_bounds = array<i64: 8, 128>}]} {
    %c0 = arith.constant 0 : index
    %c0_0 = arith.constant 0 : index
    %0 = vector.load %arg1[%c0, %c0_0] : memref<8x16xf32, #tpu.memory_space<vmem>>, vector<8x16xf32>
    %c0_1 = arith.constant 0 : index
    %c0_2 = arith.constant 0 : index
    %1 = vector.load %arg4[%c0_1, %c0_2] : memref<16x128xf32, #tpu.memory_space<vmem>>, vector<16x128xf32>
    %cst = arith.constant dense<0.000000e+00> : vector<8x128xf32>
    %2 = tpu.matmul %0, %1, %cst {dimension_numbers = #tpu.dot_dimension_numbers<[1], [0], [0], [1], [0, 0, 1, 1], [], []>} : vector<8x16xf32>, vector<16x128xf32>, vector<8x128xf32> -> vector<8x128xf32>
    %c0_3 = arith.constant 0 : index
    %c0_4 = arith.constant 0 : index
    %3 = vector.load %arg7[%c0_3, %c0_4] : memref<1x128xf32, #tpu.memory_space<vmem>>, vector<1x128xf32>
    %4 = vector.broadcast %3 : vector<1x128xf32> to vector<8x128xf32>
    %5 = arith.addf %2, %4 : vector<8x128xf32>
    %c0_5 = arith.constant 0 : index
    %c0_6 = arith.constant 0 : index
    %6 = vector.load %arg2[%c0_5, %c0_6] : memref<8x32xf32, #tpu.memory_space<vmem>>, vector<8x32xf32>
    %c0_7 = arith.constant 0 : index
    %c0_8 = arith.constant 0 : index
    %7 = vector.load %arg5[%c0_7, %c0_8] : memref<32x128xf32, #tpu.memory_space<vmem>>, vector<32x128xf32>
    %cst_9 = arith.constant dense<0.000000e+00> : vector<8x128xf32>
    %8 = tpu.matmul %6, %7, %cst_9 {dimension_numbers = #tpu.dot_dimension_numbers<[1], [0], [0], [1], [0, 0, 1, 1], [], []>} : vector<8x32xf32>, vector<32x128xf32>, vector<8x128xf32> -> vector<8x128xf32>
    %c0_10 = arith.constant 0 : index
    %c0_11 = arith.constant 0 : index
    %9 = vector.load %arg8[%c0_10, %c0_11] : memref<1x128xf32, #tpu.memory_space<vmem>>, vector<1x128xf32>
    %10 = vector.broadcast %9 : vector<1x128xf32> to vector<8x128xf32>
    %11 = arith.addf %8, %10 : vector<8x128xf32>
    %c0_12 = arith.constant 0 : index
    %c0_13 = arith.constant 0 : index
    %12 = vector.load %arg3[%c0_12, %c0_13] : memref<8x24xf32, #tpu.memory_space<vmem>>, vector<8x24xf32>
    %c0_14 = arith.constant 0 : index
    %c0_15 = arith.constant 0 : index
    %13 = vector.load %arg6[%c0_14, %c0_15] : memref<24x128xf32, #tpu.memory_space<vmem>>, vector<24x128xf32>
    %cst_16 = arith.constant dense<0.000000e+00> : vector<8x128xf32>
    %14 = tpu.matmul %12, %13, %cst_16 {dimension_numbers = #tpu.dot_dimension_numbers<[1], [0], [0], [1], [0, 0, 1, 1], [], []>} : vector<8x24xf32>, vector<24x128xf32>, vector<8x128xf32> -> vector<8x128xf32>
    %c0_17 = arith.constant 0 : index
    %c0_18 = arith.constant 0 : index
    %15 = vector.load %arg9[%c0_17, %c0_18] : memref<1x128xf32, #tpu.memory_space<vmem>>, vector<1x128xf32>
    %16 = vector.broadcast %15 : vector<1x128xf32> to vector<8x128xf32>
    %17 = arith.addf %14, %16 : vector<8x128xf32>
    %18 = math.tanh %5 : vector<8x128xf32>
    %19 = math.tanh %11 : vector<8x128xf32>
    %20 = math.tanh %17 : vector<8x128xf32>
    %21 = vector.extract_strided_slice %5 {offsets = [0, 32], sizes = [8, 3], strides = [1, 1]} : vector<8x128xf32> to vector<8x3xf32>
    %22 = vector.extract_strided_slice %11 {offsets = [0, 32], sizes = [8, 3], strides = [1, 1]} : vector<8x128xf32> to vector<8x3xf32>
    %23 = arith.addf %21, %22 : vector<8x3xf32>
    %24 = vector.extract_strided_slice %17 {offsets = [0, 32], sizes = [8, 3], strides = [1, 1]} : vector<8x128xf32> to vector<8x3xf32>
    %25 = arith.addf %23, %24 : vector<8x3xf32>
    %26 = vector.extract_strided_slice %25 {offsets = [0, 0], sizes = [8, 1], strides = [1, 1]} : vector<8x3xf32> to vector<8x1xf32>
    %27 = vector.extract_strided_slice %25 {offsets = [0, 1], sizes = [8, 1], strides = [1, 1]} : vector<8x3xf32> to vector<8x1xf32>
    %28 = vector.extract_strided_slice %25 {offsets = [0, 2], sizes = [8, 1], strides = [1, 1]} : vector<8x3xf32> to vector<8x1xf32>
    %29 = arith.maximumf %26, %27 : vector<8x1xf32>
    %30 = arith.maximumf %29, %28 : vector<8x1xf32>
    %31 = arith.subf %26, %30 : vector<8x1xf32>
    %32 = math.exp %31 : vector<8x1xf32>
    %33 = arith.subf %27, %30 : vector<8x1xf32>
    %34 = math.exp %33 : vector<8x1xf32>
    %35 = arith.subf %28, %30 : vector<8x1xf32>
    %36 = math.exp %35 : vector<8x1xf32>
    %37 = arith.addf %32, %34 : vector<8x1xf32>
    %38 = arith.addf %37, %36 : vector<8x1xf32>
    %39 = tpu.reciprocal %38 {approx = true} : vector<8x1xf32> -> vector<8x1xf32>
    %40 = arith.mulf %38, %39 : vector<8x1xf32>
    %cst_19 = arith.constant 2.000000e+00 : f32
    %41 = vector.broadcast %cst_19 : f32 to vector<8x1xf32>
    %42 = arith.subf %41, %40 : vector<8x1xf32>
    %43 = arith.mulf %39, %42 : vector<8x1xf32>
    %44 = arith.mulf %32, %43 : vector<8x1xf32>
    %45 = arith.mulf %34, %43 : vector<8x1xf32>
    %46 = arith.mulf %36, %43 : vector<8x1xf32>
    %47 = vector.broadcast %44 : vector<8x1xf32> to vector<8x128xf32>
    %48 = arith.mulf %47, %18 : vector<8x128xf32>
    %49 = vector.broadcast %45 : vector<8x1xf32> to vector<8x128xf32>
    %50 = arith.mulf %49, %19 : vector<8x128xf32>
    %51 = arith.addf %48, %50 : vector<8x128xf32>
    %52 = vector.broadcast %46 : vector<8x1xf32> to vector<8x128xf32>
    %53 = arith.mulf %52, %20 : vector<8x128xf32>
    %54 = arith.addf %51, %53 : vector<8x128xf32>
    %55 = tpu.iota {dimensions = array<i32: 1>} : vector<8x128xi32>
    %c32_i32 = arith.constant 32 : i32
    %56 = vector.broadcast %c32_i32 : i32 to vector<8x128xi32>
    %57 = arith.cmpi eq, %55, %56 : vector<8x128xi32>
    %c33_i32 = arith.constant 33 : i32
    %58 = vector.broadcast %c33_i32 : i32 to vector<8x128xi32>
    %59 = arith.cmpi eq, %55, %58 : vector<8x128xi32>
    %c34_i32 = arith.constant 34 : i32
    %60 = vector.broadcast %c34_i32 : i32 to vector<8x128xi32>
    %61 = arith.cmpi eq, %55, %60 : vector<8x128xi32>
    %62 = vector.shape_cast %46 : vector<8x1xf32> to vector<8x1xf32>
    %63 = vector.broadcast %62 : vector<8x1xf32> to vector<8x128xf32>
    %64 = arith.select %61, %63, %54 : vector<8x128xi1>, vector<8x128xf32>
    %65 = vector.shape_cast %45 : vector<8x1xf32> to vector<8x1xf32>
    %66 = vector.broadcast %65 : vector<8x1xf32> to vector<8x128xf32>
    %67 = arith.select %59, %66, %64 : vector<8x128xi1>, vector<8x128xf32>
    %68 = vector.shape_cast %44 : vector<8x1xf32> to vector<8x1xf32>
    %69 = vector.broadcast %68 : vector<8x1xf32> to vector<8x128xf32>
    %70 = arith.select %57, %69, %67 : vector<8x128xi1>, vector<8x128xf32>
    %c0_20 = arith.constant 0 : index
    %c0_21 = arith.constant 0 : index
    %71 = vector.load %arg10[%c0_20, %c0_21] : memref<8x128xf32, #tpu.memory_space<vmem>>, vector<8x128xf32>
    tpu.vector_store %arg10[%c0_20, %c0_21], %70 {strides = array<i32>} : memref<8x128xf32, #tpu.memory_space<vmem>>, vector<8x128xf32>,
    return
  }
  func.func @transform_0(%arg0: i32) -> (i32, i32) {
    %c0_i32 = arith.constant 0 : i32
    %c0_i32_0 = arith.constant 0 : i32
    return %arg0, %c0_i32 : i32, i32
  }
  func.func @transform_1(%arg0: i32) -> (i32, i32) {
    %c0_i32 = arith.constant 0 : i32
    %c0_i32_0 = arith.constant 0 : i32
    return %arg0, %c0_i32 : i32, i32
  }
  func.func @transform_2(%arg0: i32) -> (i32, i32) {
    %c0_i32 = arith.constant 0 : i32
    %c0_i32_0 = arith.constant 0 : i32
    return %arg0, %c0_i32 : i32, i32
  }
  func.func @transform_3(%arg0: i32) -> (i32, i32) {
    %c0_i32 = arith.constant 0 : i32
    %c0_i32_0 = arith.constant 0 : i32
    %c0_i32_1 = arith.constant 0 : i32
    return %c0_i32, %c0_i32_0 : i32, i32
  }
  func.func @transform_4(%arg0: i32) -> (i32, i32) {
    %c0_i32 = arith.constant 0 : i32
    %c0_i32_0 = arith.constant 0 : i32
    %c0_i32_1 = arith.constant 0 : i32
    return %c0_i32, %c0_i32_0 : i32, i32
  }
  func.func @transform_5(%arg0: i32) -> (i32, i32) {
    %c0_i32 = arith.constant 0 : i32
    %c0_i32_0 = arith.constant 0 : i32
    %c0_i32_1 = arith.constant 0 : i32
    return %c0_i32, %c0_i32_0 : i32, i32
  }
  func.func @transform_6(%arg0: i32) -> (i32, i32) {
    %c0_i32 = arith.constant 0 : i32
    %c0_i32_0 = arith.constant 0 : i32
    %c0_i32_1 = arith.constant 0 : i32
    return %c0_i32, %c0_i32_0 : i32, i32
  }
  func.func @transform_7(%arg0: i32) -> (i32, i32) {
    %c0_i32 = arith.constant 0 : i32
    %c0_i32_0 = arith.constant 0 : i32
    %c0_i32_1 = arith.constant 0 : i32
    return %c0_i32, %c0_i32_0 : i32, i32
  }
  func.func @transform_8(%arg0: i32) -> (i32, i32) {
    %c0_i32 = arith.constant 0 : i32
    %c0_i32_0 = arith.constant 0 : i32
    %c0_i32_1 = arith.constant 0 : i32
    return %c0_i32, %c0_i32_0 : i32, i32
  }
  func.func @transform_9(%arg0: i32) -> (i32, i32) {
    %c0_i32 = arith.constant 0 : i32
    %c0_i32_0 = arith.constant 0 : i32
    return %arg0, %c0_i32 : i32, i32
  }
}

</mosaic_0001>

<llo_original>
// kernel: three_way_gmu.1
$region0: #{three_way_gmu.1}
  #allocation0 [shape = 'u32[]', space=smem, size = 0x4, offset = 0x4, fixed_abs, tag = 'smem constant byte address 0x4 - core index']
  #allocation1 [shape = 'u32[72,128]{1,0:T(1,128)}', space=vmem, size = 0x9000, scoped, tag = 'internal scratch']
  %s0 = inlined_call_operand.vmem [shape: f32[8,16], index: 0, kind: input, shape index: {}]
  %s1 = inlined_call_operand.vmem [shape: f32[8,32], index: 1, kind: input, shape index: {}]
  %s2 = inlined_call_operand.vmem [shape: f32[8,24], index: 2, kind: input, shape index: {}]
  %s3 = inlined_call_operand.vmem [shape: f32[16,128], index: 3, kind: input, shape index: {}]
  %s4 = inlined_call_operand.vmem [shape: f32[32,128], index: 4, kind: input, shape index: {}]
  %s5 = inlined_call_operand.vmem [shape: f32[24,128], index: 5, kind: input, shape index: {}]
  %s6 = inlined_call_operand.vmem [shape: f32[1,128], index: 6, kind: input, shape index: {}]
  %s7 = inlined_call_operand.vmem [shape: f32[1,128], index: 7, kind: input, shape index: {}]
  %s8 = inlined_call_operand.vmem [shape: f32[1,128], index: 8, kind: input, shape index: {}]
  %s9 = inlined_call_operand.vmem [shape: f32[8,128], index: 9, kind: output, shape index: {}]
  %s10 = sld [smem:[#allocation0]]
  $region46: #{three_way_gmu.1} parent=0
    _
  %s12 = ssub.s32 1, %s10
  %s13 = scalar_select 0, %s12, %s10
  // Predicated region
  $region2: #{three_way_gmu.1} parent=0 // pred_check
    _
  $region3: #{three_way_gmu.1} parent=0 // pred_check_branch
    %15 = sbr.rel (0) target = $region5
  $region4: #{three_way_gmu.1} parent=0 // pred_region
    _
  $region5: #{three_way_gmu.1} parent=0 // pred_fallthru
    _
  // Predicated region
  $region6: #{three_way_gmu.1} parent=0 // pred_check
    _
  $region7: #{three_way_gmu.1} parent=0 // pred_check_branch
    %17 = sbr.rel (0) target = $region9
  $region8: #{three_way_gmu.1} parent=0 // pred_region
    _
  $region9: #{three_way_gmu.1} parent=0 // pred_fallthru
    _
  // Predicated region
  $region10: #{three_way_gmu.1} parent=0 // pred_check
    _
  $region11: #{three_way_gmu.1} parent=0 // pred_check_branch
    %19 = sbr.rel (0) target = $region13
  $region12: #{three_way_gmu.1} parent=0 // pred_region
    _
  $region13: #{three_way_gmu.1} parent=0 // pred_fallthru
    _
  // Predicated region
  $region14: #{three_way_gmu.1} parent=0 // pred_check
    _
  $region15: #{three_way_gmu.1} parent=0 // pred_check_branch
    %21 = sbr.rel (0) target = $region17
  $region16: #{three_way_gmu.1} parent=0 // pred_region
    _
  $region17: #{three_way_gmu.1} parent=0 // pred_fallthru
    _
  // Predicated region
  $region18: #{three_way_gmu.1} parent=0 // pred_check
    _
  $region19: #{three_way_gmu.1} parent=0 // pred_check_branch
    %23 = sbr.rel (0) target = $region21
  $region20: #{three_way_gmu.1} parent=0 // pred_region
    _
  $region21: #{three_way_gmu.1} parent=0 // pred_fallthru
    _
  // Predicated region
  $region22: #{three_way_gmu.1} parent=0 // pred_check
    _
  $region23: #{three_way_gmu.1} parent=0 // pred_check_branch
    %25 = sbr.rel (0) target = $region25
  $region24: #{three_way_gmu.1} parent=0 // pred_region
    _
  $region25: #{three_way_gmu.1} parent=0 // pred_fallthru
    _
  // Predicated region
  $region26: #{three_way_gmu.1} parent=0 // pred_check
    _
  $region27: #{three_way_gmu.1} parent=0 // pred_check_branch
    %27 = sbr.rel (0) target = $region29
  $region28: #{three_way_gmu.1} parent=0 // pred_region
    _
  $region29: #{three_way_gmu.1} parent=0 // pred_fallthru
    _
  // Predicated region
  $region30: #{three_way_gmu.1} parent=0 // pred_check
    _
  $region31: #{three_way_gmu.1} parent=0 // pred_check_branch
    %29 = sbr.rel (0) target = $region33
  $region32: #{three_way_gmu.1} parent=0 // pred_region
    _
  $region33: #{three_way_gmu.1} parent=0 // pred_fallthru
    _
  // Predicated region
  $region34: #{three_way_gmu.1} parent=0 // pred_check
    _
  $region35: #{three_way_gmu.1} parent=0 // pred_check_branch
    %31 = sbr.rel (0) target = $region37
  $region36: #{three_way_gmu.1} parent=0 // pred_region
    _
  $region37: #{three_way_gmu.1} parent=0 // pred_fallthru
    _
  %v32 = vld [vmem:[%s0] sm:$0xff]
  %v33 = vld [vmem:[%s3] sm:$0xff]
  %v34 = vld [vmem:[%s3 + $0x8] sm:$0xff]
  %v35 = vld [vmem:[%s6] sm:$0x1]
  %v37 = vperm.slane %v35, 0
  %vm39 = vcmask 130048
  %v41 = vsel %vm39, %v32, 0
  %43 = vmatpush.msra.mxu0 0.0
  %44 = vmatpush.msra.mxu0 0.0
  %45 = vmatpush.msra.mxu0 0.0
  %46 = vmatpush.msra.mxu0 0.0
  %47 = vmatpush.msra.mxu0 0.0
  %48 = vmatpush.msra.mxu0 0.0
  %49 = vmatpush.msra.mxu0 0.0
  %50 = vmatpush.msra.mxu0 0.0
  %51 = vmatpush.msra.mxu0 0.0
  %52 = vmatpush.msra.mxu0 0.0
  %53 = vmatpush.msra.mxu0 0.0
  %54 = vmatpush.msra.mxu0 0.0
  %55 = vmatpush.msra.mxu0 0.0
  %56 = vmatpush.msra.mxu0 0.0
  %57 = vmatpush.msra.mxu0 %v34
  %58 = vmatpush.msra.mxu0 %v33
  %59 = vmatmul.f32.gmra.mxu0 %v41
  %v60 = vpop.f32.mrf.mxu0
  %v61 = vadd.f32 %v37, %v60
  %62 = vdwg.mxu0
  %v63 = vld [vmem:[%s1] sm:$0xff]
  %v64 = vld [vmem:[%s4] sm:$0xff]
  %v65 = vld [vmem:[%s4 + $0x8] sm:$0xff]
  %v66 = vld [vmem:[%s4 + $0x10] sm:$0xff]
  %v67 = vld [vmem:[%s4 + $0x18] sm:$0xff]
  %v68 = vld [vmem:[%s7] sm:$0x1]
  %v70 = vperm.slane %v68, 0
  %vm72 = vcmask 261120
  %v74 = vsel %vm72, %v63, 0
  %76 = vmatpush.msra.mxu0 0.0
  %77 = vmatpush.msra.mxu0 0.0
  %78 = vmatpush.msra.mxu0 0.0
  %79 = vmatpush.msra.mxu0 0.0
  %80 = vmatpush.msra.mxu0 0.0
  %81 = vmatpush.msra.mxu0 0.0
  %82 = vmatpush.msra.mxu0 0.0
  %83 = vmatpush.msra.mxu0 0.0
  %84 = vmatpush.msra.mxu0 0.0
  %85 = vmatpush.msra.mxu0 0.0
  %86 = vmatpush.msra.mxu0 0.0
  %87 = vmatpush.msra.mxu0 0.0
  %88 = vmatpush.msra.mxu0 %v67
  %89 = vmatpush.msra.mxu0 %v66
  %90 = vmatpush.msra.mxu0 %v65
  %91 = vmatpush.msra.mxu0 %v64
  %92 = vmatmul.f32.gmra.mxu0 %v74
  %v93 = vpop.f32.mrf.mxu0
  %v94 = vadd.f32 %v70, %v93
  %95 = vdwg.mxu0
  %v96 = vld [vmem:[%s2] sm:$0xff]
  %v97 = vld [vmem:[%s5] sm:$0xff]
  %v98 = vld [vmem:[%s5 + $0x8] sm:$0xff]
  %v99 = vld [vmem:[%s5 + $0x10] sm:$0xff]
  %v100 = vld [vmem:[%s8] sm:$0x1]
  %v102 = vperm.slane %v100, 0
  %vm104 = vcmask 195584
  %v106 = vsel %vm104, %v96, 0
  %108 = vmatpush.msra.mxu0 0.0
  %109 = vmatpush.msra.mxu0 0.0
  %110 = vmatpush.msra.mxu0 0.0
  %111 = vmatpush.msra.mxu0 0.0
  %112 = vmatpush.msra.mxu0 0.0
  %113 = vmatpush.msra.mxu0 0.0
  %114 = vmatpush.msra.mxu0 0.0
  %115 = vmatpush.msra.mxu0 0.0
  %116 = vmatpush.msra.mxu0 0.0
  %117 = vmatpush.msra.mxu0 0.0
  %118 = vmatpush.msra.mxu0 0.0
  %119 = vmatpush.msra.mxu0 0.0
  %120 = vmatpush.msra.mxu0 0.0
  %121 = vmatpush.msra.mxu0 %v99
  %122 = vmatpush.msra.mxu0 %v98
  %123 = vmatpush.msra.mxu0 %v97
  %124 = vmatmul.f32.gmra.mxu0 %v106
  %v125 = vpop.f32.mrf.mxu0
  %v126 = vadd.f32 %v102, %v125
  %127 = vdwg.mxu0
  %v128 = vtanh.pop %v61
  %v129 = vtanh.pop %v94
  %v130 = vtanh.pop %v126
  %v131 = vadd.f32 %v61, %v94
  %v132 = vadd.f32 %v131, %v126
  %134 = vrot.lane.b32.xlu0 %v132, 127
  %v135 = vpop.permute.xlu0 %134
  %v137 = vmax.f32 %v132, %v135
  %138 = vrot.lane.b32.xlu0 %v132, 126
  %v139 = vpop.permute.xlu0 %138
  %v141 = vmax.f32 %v137, %v139
  %v142 = vsub.f32 %v132, %v141
  %v143 = vmul.f32 %v142, 1.442695
  %v144 = vpow.pop %v143
  %146 = vrot.lane.b32.xlu0 %v141, 1
  %v147 = vpop.permute.xlu0 %146
  %v149 = vsub.f32 %v132, %v147
  %v150 = vmul.f32 %v149, 1.442695
  %v151 = vpow.pop %v150
  %152 = vrot.lane.b32.xlu0 %v141, 2
  %v153 = vpop.permute.xlu0 %152
  %v155 = vsub.f32 %v132, %v153
  %v156 = vmul.f32 %v155, 1.442695
  %v157 = vpow.pop %v156
  %159 = vrot.lane.b32.xlu0 %v151, 127
  %v160 = vpop.permute.xlu0 %159
  %v162 = vadd.f32 %v144, %v160
  %164 = vrot.lane.b32.xlu0 %v157, 126
  %v165 = vpop.permute.xlu0 %164
  %v167 = vadd.f32 %v162, %v165
  %v168 = vrcp.pop %v167
  %v169 = vmul.f32 %v167, %v168
  %v170 = vsub.f32 2.0, %v169
  %v171 = vmul.f32 %v168, %v170
  %v172 = vmul.f32 %v144, %v171
  %174 = vrot.lane.b32.xlu0 %v171, 1
  %v175 = vpop.permute.xlu0 %174
  %v177 = vmul.f32 %v151, %v175
  %178 = vrot.lane.b32.xlu0 %v171, 2
  %v179 = vpop.permute.xlu0 %178
  %v181 = vmul.f32 %v157, %v179
  %183 = vset.pattern.permute.xlu0 32
  %184 = vperm.xlu0 %183, %v172
  %v185 = vpop.permute.xlu0 %184
  %v187 = vmul.f32 %v185, %v128
  %189 = vset.pattern.permute.xlu0 33
  %190 = vperm.xlu0 %189, %v177
  %v191 = vpop.permute.xlu0 %190
  %v193 = vmul.f32 %v191, %v129
  %v194 = vadd.f32 %v187, %v193
  %196 = vset.pattern.permute.xlu0 34
  %197 = vperm.xlu0 %196, %v181
  %v198 = vpop.permute.xlu0 %197
  %v200 = vmul.f32 %v198, %v130
  %v201 = vadd.f32 %v194, %v200
  %v202 = vlaneseq
  %v203 = vand.u32 %v202, 127
  %vm204 = vcmp.eq.s32.totalorder %v203, 32
  %vm205 = vcmp.eq.s32.totalorder %v203, 33
  %vm206 = vcmp.eq.s32.totalorder %v203, 34
  %v207 = vsel %vm206, %v198, %v201
  %v208 = vsel %vm205, %v191, %v207
  %v209 = vsel %vm204, %v185, %v208
  %210 = vst [vmem:[%s9] sm:$0xff] %v209
  // Predicated region
  $region38: #{three_way_gmu.1} parent=0 // pred_check
    _
  $region39: #{three_way_gmu.1} parent=0 // pred_check_branch
    %212 = sbr.rel (0) target = $region41
  $region40: #{three_way_gmu.1} parent=0 // pred_region
    _
  $region41: #{three_way_gmu.1} parent=0 // pred_fallthru
    _
  // Predicated region
  $region42: #{three_way_gmu.1} parent=0 // pred_check
    _
  $region43: #{three_way_gmu.1} parent=0 // pred_check_branch
    %214 = sbr.rel (0) target = $region45
  $region44: #{three_way_gmu.1} parent=0 // pred_region
    _
  $region45: #{three_way_gmu.1} parent=0 // pred_fallthru
    _

</llo_original>
